<compile_context>
chip_gen: v6e
topology: v6e:2x2x1
jax: 0.10.0
libtpu: 0.0.40
codegen_flags: <defaults>
</compile_context>

<pallas_src>
import functools

import jax
import jax.numpy as jnp
from jax.experimental import pallas as pl
from jax.experimental.pallas import tpu as pltpu

# ----- "args" equivalent (deterministic, synthetic config) -------------------
NUM_LAYERS = 3
NODE_FEAT_DIM = 8
EDGE_FEAT_DIM = 4          # unused for GIN
NUM_HID = 32               # args.num_g_hid
NUM_OUT = 16               # args.gnn_out_dim
GNN_TYPE = "GIN"           # args.gnn_type
DROPOUT_P = 0.1            # eval-mode forward -> F.dropout(training=False) = identity
EPS = 0.0                  # GINConv default eps (exactly representable; see note below)

FEAT_PAD = 128             # pad every feature dim to 128 lanes (lane-dense stores)
NODE_PAD_MULT = 16         # pad node count to a bf16-sublane-friendly multiple


def _round_up(x, m):
    return (x + m - 1) // m * m


# --------------------------- fused Pallas kernel -----------------------------
def gnn_fused_kernel(a_ref, x_ref, w1_ref, b1_ref, w2_ref, b2_ref, o_ref,
                     *, num_layers):
    """All GIN layers in one kernel; A' and h stay resident on-chip.

    a_ref  : [Np, Np]   bf16  A' = A + (1+eps)*I on real rows (self term folded)
    x_ref  : [Np, Fp]   bf16  zero-padded node features
    w1_ref : [L, Fp, Fp] bf16 stacked zero-padded Linear-1 weights
    b1_ref : [L, 1,  Fp] f32  stacked zero-padded Linear-1 biases
    w2_ref : [L, Fp, Fp] bf16 stacked zero-padded Linear-2 weights
    b2_ref : [L, 1,  Fp] f32  stacked zero-padded Linear-2 biases
    o_ref  : [Np, Fp]   f32   padded output node features
    """
    a = a_ref[...]                      # bf16; loaded once, reused by every layer
    h = x_ref[...]                      # bf16; carried in vregs/VMEM across layers
    for l in range(num_layers):         # static unroll (num_layers is small)
        # Neighbor-sum aggregation + self term: bf16 MXU inputs, f32 accumulation.
        agg = jnp.dot(a, h, preferred_element_type=jnp.float32)
        # GIN MLP: Linear -> gnn_act (ReLU) -> Linear.
        # bf16 MXU inputs, f32 accumulation; bias-add/ReLU stay f32 (v5e-safe),
        # the bf16 down-cast happens only at the dot boundary.
        h1 = jnp.dot(agg.astype(jnp.bfloat16), w1_ref[l],
                     preferred_element_type=jnp.float32)
        h1 = jnp.maximum(h1 + b1_ref[l], 0.0)
        out = jnp.dot(h1.astype(jnp.bfloat16), w2_ref[l],
                      preferred_element_type=jnp.float32)
        out = out + b2_ref[l]
        if l < num_layers - 1:
            # between layers: act_layer (ReLU) in f32; dropout is identity in
            # eval mode; fuse the bf16 down-cast for the next A'@h right here.
            h = jnp.maximum(out, 0.0).astype(jnp.bfloat16)
        else:
            o_ref[...] = out.astype(o_ref.dtype)


# ------------------------------ host wrapper ---------------------------------
@jax.jit
def gnn_forward(x, edge_index, params):
    """Mirrors GNN.forward for model_type='GIN' (eval mode), fully fused."""
    n, f_in = x.shape
    num_layers = len(params)
    out_dim = params[-1][2].shape[1]          # last layer's Linear-2 output dim
    np_ = _round_up(max(n, NODE_PAD_MULT), NODE_PAD_MULT)
    fp = FEAT_PAD

    # Dense adjacency A'[dst, src] = #edges, with the GIN self-term folded in
    # via a diagonal scatter restricted to the first n (real) rows — a single
    # Np^2 temporary, no jnp.eye materialization, padded rows stay exactly 0.
    # PyG flow "source_to_target": messages from src (row 0) aggregated at dst (row 1).
    src, dst = edge_index[0], edge_index[1]
    diag = jnp.arange(n, dtype=jnp.int32)
    a = (jnp.zeros((np_, np_), jnp.float32)
         .at[dst, src].add(1.0)
         .at[diag, diag].add(1.0 + EPS))
    # Small integer edge counts and 1+eps=2^k are exact in bf16.  If EPS ever
    # becomes nonzero/learnable, keep the (1+eps)*x self term in f32 instead.
    a = a.astype(jnp.bfloat16)

    # Zero-pad features and parameters to lane-dense shapes; stack layers.
    # Weights/activations go to bf16 (fast MXU path, half the HBM bytes);
    # biases stay f32 so the f32 epilogue math matches the reference closely.
    x_pad = (jnp.zeros((np_, fp), jnp.float32).at[:n, :f_in].set(x)
             .astype(jnp.bfloat16))

    def pad_w(w):
        return jnp.zeros((fp, fp), jnp.float32).at[:w.shape[0], :w.shape[1]].set(w)

    def pad_b(b):
        return jnp.zeros((1, fp), jnp.float32).at[:, :b.shape[1]].set(b)

    w1s = jnp.stack([pad_w(w1) for (w1, _, _, _) in params]).astype(jnp.bfloat16)
    b1s = jnp.stack([pad_b(b1) for (_, b1, _, _) in params])
    w2s = jnp.stack([pad_w(w2) for (_, _, w2, _) in params]).astype(jnp.bfloat16)
    b2s = jnp.stack([pad_b(b2) for (_, _, _, b2) in params])

    flops = num_layers * (2 * np_ * np_ * fp + 2 * (2 * np_ * fp * fp))
    bytes_accessed = (a.size * 2 + x_pad.size * 2 + w1s.size * 2 + b1s.size * 4
                      + w2s.size * 2 + b2s.size * 4 + np_ * fp * 4)

    out_pad = pl.pallas_call(
        functools.partial(gnn_fused_kernel, num_layers=num_layers),
        out_shape=jax.ShapeDtypeStruct((np_, fp), jnp.float32),
        in_specs=[pl.BlockSpec(memory_space=pltpu.MemorySpace.VMEM)] * 6,
        out_specs=pl.BlockSpec(memory_space=pltpu.MemorySpace.VMEM),
        cost_estimate=pl.CostEstimate(flops=flops, transcendentals=0,
                                      bytes_accessed=bytes_accessed),
    )(a, x_pad, w1s, b1s, w2s, b2s)

    return out_pad[:n, :out_dim]


def init_params(key):
    """Deterministic GIN parameters (two Linear layers per GINConv)."""
    params = []
    for l in range(NUM_LAYERS):
        in_dim = NODE_FEAT_DIM if l == 0 else NUM_HID
        out_dim = NUM_OUT if l == NUM_LAYERS - 1 else NUM_HID
        key, k1, k2, k3, k4 = jax.random.split(key, 5)
        w1 = jax.random.normal(k1, (in_dim, out_dim), jnp.float32) * (1.0 / jnp.sqrt(in_dim))
        b1 = jax.random.normal(k2, (1, out_dim), jnp.float32) * 0.01
        w2 = jax.random.normal(k3, (out_dim, out_dim), jnp.float32) * (1.0 / jnp.sqrt(out_dim))
        b2 = jax.random.normal(k4, (1, out_dim), jnp.float32) * 0.01
        params.append((w1, b1, w2, b2))
    return params


if __name__ == "__main__":
    key = jax.random.PRNGKey(0)
    k_x, k_e, k_p = jax.random.split(key, 3)

    N = 16  # number of nodes
    x = jax.random.normal(k_x, (N, NODE_FEAT_DIM), jnp.float32)

    # deterministic edge set: ring graph (both directions) + a few random edges
    ring_src = jnp.arange(N, dtype=jnp.int32)
    ring_dst = jnp.roll(ring_src, -1)
    rand_src = jax.random.randint(k_e, (8,), 0, N, dtype=jnp.int32)
    rand_dst = jax.random.randint(jax.random.fold_in(k_e, 1), (8,), 0, N, dtype=jnp.int32)
    src = jnp.concatenate([ring_src, ring_dst, rand_src])
    dst = jnp.concatenate([ring_dst, ring_src, rand_dst])
    edge_index = jnp.stack([src, dst], axis=0)  # [2, E]

    params = init_params(k_p)

    out = gnn_forward(x, edge_index, params)
    out = jax.block_until_ready(out)
    assert out.shape == (N, NUM_OUT), out.shape
    print("KERNEL_OK")
</pallas_src>

<mosaic_0001>
module attributes {stable_mosaic.version = 11 : i64} {
  func.func private @main(%arg0: i32) attributes {dimension_semantics = [#tpu.dimension_semantics<core_parallel>], iteration_bounds = array<i64: 2>, tpu.core_type = #tpu.core_type<sc_scalar_subcore>, window_params = []} {
    return
  }
}

module attributes {stable_mosaic.version = 11 : i64} {
  func.func private @main(%arg0: i32) attributes {dimension_semantics = [#tpu.dimension_semantics<core_parallel>], iteration_bounds = array<i64: 2>, tpu.core_type = #tpu.core_type<sc_scalar_subcore>, window_params = []} {
    return
  }
}

module attributes {stable_mosaic.version = 11 : i64} {
  func.func @gnn_fused_kernel(%arg0: memref<16x16xbf16, #tpu.memory_space<vmem>>, %arg1: memref<16x128xbf16, #tpu.memory_space<vmem>>, %arg2: memref<3x128x128xbf16, #tpu.memory_space<vmem>>, %arg3: memref<3x1x128xf32, #tpu.memory_space<vmem>>, %arg4: memref<3x128x128xbf16, #tpu.memory_space<vmem>>, %arg5: memref<3x1x128xf32, #tpu.memory_space<vmem>>, %arg6: memref<16x128xf32, #tpu.memory_space<vmem>>) attributes {dimension_semantics = [], scalar_prefetch = 0 : i64, scratch_operands = 0 : i64, tpu.core_type = #tpu.core_type<tc>} {
    %c0 = arith.constant 0 : index
    %c0_0 = arith.constant 0 : index
    %0 = vector.load %arg0[%c0, %c0_0] : memref<16x16xbf16, #tpu.memory_space<vmem>>, vector<16x16xbf16>
    %c0_1 = arith.constant 0 : index
    %c0_2 = arith.constant 0 : index
    %1 = vector.load %arg1[%c0_1, %c0_2] : memref<16x128xbf16, #tpu.memory_space<vmem>>, vector<16x128xbf16>
    %cst = arith.constant dense<0.000000e+00> : vector<16x128xf32>
    %2 = tpu.matmul %0, %1, %cst {dimension_numbers = #tpu.dot_dimension_numbers<[1], [0], [0], [1], [0, 0, 1, 1], [], []>} : vector<16x16xbf16>, vector<16x128xbf16>, vector<16x128xf32> -> vector<16x128xf32>
    %3 = arith.truncf %2 : vector<16x128xf32> to vector<16x128xbf16>
    %c0_3 = arith.constant 0 : index
    %c0_4 = arith.constant 0 : index
    %c0_5 = arith.constant 0 : index
    %4 = vector.load %arg2[%c0_3, %c0_4, %c0_5] : memref<3x128x128xbf16, #tpu.memory_space<vmem>>, vector<1x128x128xbf16>
    %5 = vector.shape_cast %4 : vector<1x128x128xbf16> to vector<128x128xbf16>
    %cst_6 = arith.constant dense<0.000000e+00> : vector<16x128xf32>
    %6 = tpu.matmul %3, %5, %cst_6 {dimension_numbers = #tpu.dot_dimension_numbers<[1], [0], [0], [1], [0, 0, 1, 1], [], []>} : vector<16x128xbf16>, vector<128x128xbf16>, vector<16x128xf32> -> vector<16x128xf32>
    %c0_7 = arith.constant 0 : index
    %c0_8 = arith.constant 0 : index
    %c0_9 = arith.constant 0 : index
    %7 = vector.load %arg3[%c0_7, %c0_8, %c0_9] : memref<3x1x128xf32, #tpu.memory_space<vmem>>, vector<1x1x128xf32>
    %8 = vector.shape_cast %7 : vector<1x1x128xf32> to vector<1x128xf32>
    %9 = vector.broadcast %8 : vector<1x128xf32> to vector<16x128xf32>
    %10 = arith.addf %6, %9 : vector<16x128xf32>
    %cst_10 = arith.constant 0.000000e+00 : f32
    %11 = vector.broadcast %cst_10 : f32 to vector<16x128xf32>
    %12 = arith.maximumf %10, %11 : vector<16x128xf32>
    %13 = arith.truncf %12 : vector<16x128xf32> to vector<16x128xbf16>
    %c0_11 = arith.constant 0 : index
    %c0_12 = arith.constant 0 : index
    %c0_13 = arith.constant 0 : index
    %14 = vector.load %arg4[%c0_11, %c0_12, %c0_13] : memref<3x128x128xbf16, #tpu.memory_space<vmem>>, vector<1x128x128xbf16>
    %15 = vector.shape_cast %14 : vector<1x128x128xbf16> to vector<128x128xbf16>
    %cst_14 = arith.constant dense<0.000000e+00> : vector<16x128xf32>
    %16 = tpu.matmul %13, %15, %cst_14 {dimension_numbers = #tpu.dot_dimension_numbers<[1], [0], [0], [1], [0, 0, 1, 1], [], []>} : vector<16x128xbf16>, vector<128x128xbf16>, vector<16x128xf32> -> vector<16x128xf32>
    %c0_15 = arith.constant 0 : index
    %c0_16 = arith.constant 0 : index
    %c0_17 = arith.constant 0 : index
    %17 = vector.load %arg5[%c0_15, %c0_16, %c0_17] : memref<3x1x128xf32, #tpu.memory_space<vmem>>, vector<1x1x128xf32>
    %18 = vector.shape_cast %17 : vector<1x1x128xf32> to vector<1x128xf32>
    %19 = vector.broadcast %18 : vector<1x128xf32> to vector<16x128xf32>
    %20 = arith.addf %16, %19 : vector<16x128xf32>
    %cst_18 = arith.constant 0.000000e+00 : f32
    %21 = vector.broadcast %cst_18 : f32 to vector<16x128xf32>
    %22 = arith.maximumf %20, %21 : vector<16x128xf32>
    %23 = arith.truncf %22 : vector<16x128xf32> to vector<16x128xbf16>
    %cst_19 = arith.constant dense<0.000000e+00> : vector<16x128xf32>
    %24 = tpu.matmul %0, %23, %cst_19 {dimension_numbers = #tpu.dot_dimension_numbers<[1], [0], [0], [1], [0, 0, 1, 1], [], []>} : vector<16x16xbf16>, vector<16x128xbf16>, vector<16x128xf32> -> vector<16x128xf32>
    %25 = arith.truncf %24 : vector<16x128xf32> to vector<16x128xbf16>
    %c1 = arith.constant 1 : index
    %c0_20 = arith.constant 0 : index
    %c0_21 = arith.constant 0 : index
    %26 = vector.load %arg2[%c1, %c0_20, %c0_21] : memref<3x128x128xbf16, #tpu.memory_space<vmem>>, vector<1x128x128xbf16>
    %27 = vector.shape_cast %26 : vector<1x128x128xbf16> to vector<128x128xbf16>
    %cst_22 = arith.constant dense<0.000000e+00> : vector<16x128xf32>
    %28 = tpu.matmul %25, %27, %cst_22 {dimension_numbers = #tpu.dot_dimension_numbers<[1], [0], [0], [1], [0, 0, 1, 1], [], []>} : vector<16x128xbf16>, vector<128x128xbf16>, vector<16x128xf32> -> vector<16x128xf32>
    %c1_23 = arith.constant 1 : index
    %c0_24 = arith.constant 0 : index
    %c0_25 = arith.constant 0 : index
    %29 = vector.load %arg3[%c1_23, %c0_24, %c0_25] : memref<3x1x128xf32, #tpu.memory_space<vmem>>, vector<1x1x128xf32>
    %30 = vector.shape_cast %29 : vector<1x1x128xf32> to vector<1x128xf32>
    %31 = vector.broadcast %30 : vector<1x128xf32> to vector<16x128xf32>
    %32 = arith.addf %28, %31 : vector<16x128xf32>
    %cst_26 = arith.constant 0.000000e+00 : f32
    %33 = vector.broadcast %cst_26 : f32 to vector<16x128xf32>
    %34 = arith.maximumf %32, %33 : vector<16x128xf32>
    %35 = arith.truncf %34 : vector<16x128xf32> to vector<16x128xbf16>
    %c1_27 = arith.constant 1 : index
    %c0_28 = arith.constant 0 : index
    %c0_29 = arith.constant 0 : index
    %36 = vector.load %arg4[%c1_27, %c0_28, %c0_29] : memref<3x128x128xbf16, #tpu.memory_space<vmem>>, vector<1x128x128xbf16>
    %37 = vector.shape_cast %36 : vector<1x128x128xbf16> to vector<128x128xbf16>
    %cst_30 = arith.constant dense<0.000000e+00> : vector<16x128xf32>
    %38 = tpu.matmul %35, %37, %cst_30 {dimension_numbers = #tpu.dot_dimension_numbers<[1], [0], [0], [1], [0, 0, 1, 1], [], []>} : vector<16x128xbf16>, vector<128x128xbf16>, vector<16x128xf32> -> vector<16x128xf32>
    %c1_31 = arith.constant 1 : index
    %c0_32 = arith.constant 0 : index
    %c0_33 = arith.constant 0 : index
    %39 = vector.load %arg5[%c1_31, %c0_32, %c0_33] : memref<3x1x128xf32, #tpu.memory_space<vmem>>, vector<1x1x128xf32>
    %40 = vector.shape_cast %39 : vector<1x1x128xf32> to vector<1x128xf32>
    %41 = vector.broadcast %40 : vector<1x128xf32> to vector<16x128xf32>
    %42 = arith.addf %38, %41 : vector<16x128xf32>
    %cst_34 = arith.constant 0.000000e+00 : f32
    %43 = vector.broadcast %cst_34 : f32 to vector<16x128xf32>
    %44 = arith.maximumf %42, %43 : vector<16x128xf32>
    %45 = arith.truncf %44 : vector<16x128xf32> to vector<16x128xbf16>
    %cst_35 = arith.constant dense<0.000000e+00> : vector<16x128xf32>
    %46 = tpu.matmul %0, %45, %cst_35 {dimension_numbers = #tpu.dot_dimension_numbers<[1], [0], [0], [1], [0, 0, 1, 1], [], []>} : vector<16x16xbf16>, vector<16x128xbf16>, vector<16x128xf32> -> vector<16x128xf32>
    %47 = arith.truncf %46 : vector<16x128xf32> to vector<16x128xbf16>
    %c2 = arith.constant 2 : index
    %c0_36 = arith.constant 0 : index
    %c0_37 = arith.constant 0 : index
    %48 = vector.load %arg2[%c2, %c0_36, %c0_37] : memref<3x128x128xbf16, #tpu.memory_space<vmem>>, vector<1x128x128xbf16>
    %49 = vector.shape_cast %48 : vector<1x128x128xbf16> to vector<128x128xbf16>
    %cst_38 = arith.constant dense<0.000000e+00> : vector<16x128xf32>
    %50 = tpu.matmul %47, %49, %cst_38 {dimension_numbers = #tpu.dot_dimension_numbers<[1], [0], [0], [1], [0, 0, 1, 1], [], []>} : vector<16x128xbf16>, vector<128x128xbf16>, vector<16x128xf32> -> vector<16x128xf32>
    %c2_39 = arith.constant 2 : index
    %c0_40 = arith.constant 0 : index
    %c0_41 = arith.constant 0 : index
    %51 = vector.load %arg3[%c2_39, %c0_40, %c0_41] : memref<3x1x128xf32, #tpu.memory_space<vmem>>, vector<1x1x128xf32>
    %52 = vector.shape_cast %51 : vector<1x1x128xf32> to vector<1x128xf32>
    %53 = vector.broadcast %52 : vector<1x128xf32> to vector<16x128xf32>
    %54 = arith.addf %50, %53 : vector<16x128xf32>
    %cst_42 = arith.constant 0.000000e+00 : f32
    %55 = vector.broadcast %cst_42 : f32 to vector<16x128xf32>
    %56 = arith.maximumf %54, %55 : vector<16x128xf32>
    %57 = arith.truncf %56 : vector<16x128xf32> to vector<16x128xbf16>
    %c2_43 = arith.constant 2 : index
    %c0_44 = arith.constant 0 : index
    %c0_45 = arith.constant 0 : index
    %58 = vector.load %arg4[%c2_43, %c0_44, %c0_45] : memref<3x128x128xbf16, #tpu.memory_space<vmem>>, vector<1x128x128xbf16>
    %59 = vector.shape_cast %58 : vector<1x128x128xbf16> to vector<128x128xbf16>
    %cst_46 = arith.constant dense<0.000000e+00> : vector<16x128xf32>
    %60 = tpu.matmul %57, %59, %cst_46 {dimension_numbers = #tpu.dot_dimension_numbers<[1], [0], [0], [1], [0, 0, 1, 1], [], []>} : vector<16x128xbf16>, vector<128x128xbf16>, vector<16x128xf32> -> vector<16x128xf32>
    %c2_47 = arith.constant 2 : index
    %c0_48 = arith.constant 0 : index
    %c0_49 = arith.constant 0 : index
    %61 = vector.load %arg5[%c2_47, %c0_48, %c0_49] : memref<3x1x128xf32, #tpu.memory_space<vmem>>, vector<1x1x128xf32>
    %62 = vector.shape_cast %61 : vector<1x1x128xf32> to vector<1x128xf32>
    %63 = vector.broadcast %62 : vector<1x128xf32> to vector<16x128xf32>
    %64 = arith.addf %60, %63 : vector<16x128xf32>
    %c0_50 = arith.constant 0 : index
    %c0_51 = arith.constant 0 : index
    %65 = vector.load %arg6[%c0_50, %c0_51] : memref<16x128xf32, #tpu.memory_space<vmem>>, vector<16x128xf32>
    tpu.vector_store %arg6[%c0_50, %c0_51], %64 {strides = array<i32>} : memref<16x128xf32, #tpu.memory_space<vmem>>, vector<16x128xf32>,
    return
  }
}

</mosaic_0001>

<llo_original>
// kernel: gnn_forward.1
$region0: #{gnn_forward.1}
  #allocation0 [shape = 'u32[]', space=smem, size = 0x4, offset = 0x4, fixed_abs, tag = 'smem constant byte address 0x4 - core index']
  #allocation1 [shape = 'u32[144,128]{1,0:T(1,128)}', space=vmem, size = 0x12000, scoped, tag = 'internal scratch']
  %s0 = inlined_call_operand.vmem [shape: bf16[16,16], index: 0, kind: input, shape index: {}]
  %s1 = inlined_call_operand.vmem [shape: bf16[16,128], index: 1, kind: input, shape index: {}]
  %s2 = inlined_call_operand.vmem [shape: bf16[3,128,128], index: 2, kind: input, shape index: {}]
  %s3 = inlined_call_operand.vmem [shape: f32[3,1,128], index: 3, kind: input, shape index: {}]
  %s4 = inlined_call_operand.vmem [shape: bf16[3,128,128], index: 4, kind: input, shape index: {}]
  %s5 = inlined_call_operand.vmem [shape: f32[3,1,128], index: 5, kind: input, shape index: {}]
  %s6 = inlined_call_operand.hbm [shape: f32[16,128], index: 6, kind: output, shape index: {}]
  %s7 = sld [smem:[#allocation0]]
  $region34: #{gnn_forward.1} parent=0
    _
  %s9 = ssub.s32 1, %s7
  %s10 = scalar_select 0, %s9, %s7
  $region1: #{gnn_forward.1} parent=0
    #allocation2 [shape = 'u8[8192]{0}', space=vmem, size = 0x2000, scoped, tag = 'output window, operand 0, single buffered']
    #allocation3 [shape = 's32[1]{0}', space=sflag, size = 0x4, scoped, tag = 'scoped memory for gnn_forward.1']
    %11 = vsyncpa [#allocation3], 0
    // Predicated region
    $region2: #{gnn_forward.1} parent=1 // pred_check
      _
    $region3: #{gnn_forward.1} parent=1 // pred_check_branch
      %13 = sbr.rel (0) target = $region5
    $region4: #{gnn_forward.1} parent=1 // pred_region
      _
    $region5: #{gnn_forward.1} parent=1 // pred_fallthru
      _
    // Predicated region
    $region6: #{gnn_forward.1} parent=1 // pred_check
      _
    $region7: #{gnn_forward.1} parent=1 // pred_check_branch
      %15 = sbr.rel (0) target = $region9
    $region8: #{gnn_forward.1} parent=1 // pred_region
      _
    $region9: #{gnn_forward.1} parent=1 // pred_fallthru
      _
    // Predicated region
    $region10: #{gnn_forward.1} parent=1 // pred_check
      _
    $region11: #{gnn_forward.1} parent=1 // pred_check_branch
      %17 = sbr.rel (0) target = $region13
    $region12: #{gnn_forward.1} parent=1 // pred_region
      _
    $region13: #{gnn_forward.1} parent=1 // pred_fallthru
      _
    // Predicated region
    $region14: #{gnn_forward.1} parent=1 // pred_check
      _
    $region15: #{gnn_forward.1} parent=1 // pred_check_branch
      %19 = sbr.rel (0) target = $region17
    $region16: #{gnn_forward.1} parent=1 // pred_region
      _
    $region17: #{gnn_forward.1} parent=1 // pred_fallthru
      _
    // Predicated region
    $region18: #{gnn_forward.1} parent=1 // pred_check
      _
    $region19: #{gnn_forward.1} parent=1 // pred_check_branch
      %21 = sbr.rel (0) target = $region21
    $region20: #{gnn_forward.1} parent=1 // pred_region
      _
    $region21: #{gnn_forward.1} parent=1 // pred_fallthru
      _
    // Predicated region
    $region22: #{gnn_forward.1} parent=1 // pred_check
      _
    $region23: #{gnn_forward.1} parent=1 // pred_check_branch
      %23 = sbr.rel (0) target = $region25
    $region24: #{gnn_forward.1} parent=1 // pred_region
      _
    $region25: #{gnn_forward.1} parent=1 // pred_fallthru
      _
    %v25 = vld [vmem:[%s0] sm:$0xf]
    %v26 = vld [vmem:[%s0 + $0x4] sm:$0xf]
    %v27 = vld [vmem:[%s1] sm:$0xf]
    %v28 = vld [vmem:[%s1 + $0x4] sm:$0xf]
    %v31 = vunpack.c.l.b16 %v25
    %v32 = vunpack.c.l.b16 %v26
    %v33 = vpack.c.b16 %v32, %v31
    %v36 = vunpack.c.l.b16 %v27
    %v37 = vunpack.c.l.b16 %v28
    %v38 = vpack.c.b16 %v37, %v36
    %vm40 = vcmask 130048
    %v42 = vsel %vm40, %v33, 0
    %44 = vmatprep.subr.bf16.mxu0 0
    %45 = vmatpush1.bf16.msra.mxu0 0
    %46 = vmatprep.subr.bf16.mxu0 0
    %47 = vmatpush1.bf16.msra.mxu0 0
    %48 = vmatprep.subr.bf16.mxu0 0
    %49 = vmatpush1.bf16.msra.mxu0 0
    %50 = vmatprep.subr.bf16.mxu0 0
    %51 = vmatpush1.bf16.msra.mxu0 0
    %52 = vmatprep.subr.bf16.mxu0 0
    %53 = vmatpush1.bf16.msra.mxu0 0
    %54 = vmatprep.subr.bf16.mxu0 0
    %55 = vmatpush1.bf16.msra.mxu0 0
    %56 = vmatprep.subr.bf16.mxu0 0
    %57 = vmatpush1.bf16.msra.mxu0 0
    %58 = vmatprep.subr.bf16.mxu0 0
    %59 = vmatpush1.bf16.msra.mxu0 %v38
    %60 = vmatprep.subr.bf16.mxu0 0
    %61 = vmatpush2.bf16.msra.mxu0 0
    %62 = vmatprep.subr.bf16.mxu0 0
    %63 = vmatpush2.bf16.msra.mxu0 0
    %64 = vmatprep.subr.bf16.mxu0 0
    %65 = vmatpush2.bf16.msra.mxu0 0
    %66 = vmatprep.subr.bf16.mxu0 0
    %67 = vmatpush2.bf16.msra.mxu0 0
    %68 = vmatprep.subr.bf16.mxu0 0
    %69 = vmatpush2.bf16.msra.mxu0 0
    %70 = vmatprep.subr.bf16.mxu0 0
    %71 = vmatpush2.bf16.msra.mxu0 0
    %72 = vmatprep.subr.bf16.mxu0 0
    %73 = vmatpush2.bf16.msra.mxu0 0
    %74 = vmatprep.subr.bf16.mxu0 0
    %75 = vmatpush2.bf16.msra.mxu0 0
    %76 = vmatprep.mubr.bf16.mxu0 0
    %77 = vmatmul.mubr.bf16.gmra.mxu0 %v42
    %v78 = vpop.f32.mrf.mxu0
    %v79 = vadd.f32 0.0, %v78
    %v80 = vpop.f32.mrf.mxu0
    %v81 = vpop.f32.mrf.mxu0
    %v82 = vadd.f32 0.0, %v81
    %v83 = vpop.f32.mrf.mxu0
    %84 = vdwg.mxu0
    %v85 = vpack.c.bf16 %v82, %v79
    %v86 = vld [vmem:[%s2] sm:$0xf]
    %v87 = vld [vmem:[%s2 + $0x4] sm:$0xf]
    %v88 = vld [vmem:[%s2 + $0x8] sm:$0xf]
    %v89 = vld [vmem:[%s2 + $0xc] sm:$0xf]
    %v90 = vld [vmem:[%s2 + $0x10] sm:$0xf]
    %v91 = vld [vmem:[%s2 + $0x14] sm:$0xf]
    %v92 = vld [vmem:[%s2 + $0x18] sm:$0xf]
    %v93 = vld [vmem:[%s2 + $0x1c] sm:$0xf]
    %v94 = vld [vmem:[%s2 + $0x20] sm:$0xf]
    %v95 = vld [vmem:[%s2 + $0x24] sm:$0xf]
    %v96 = vld [vmem:[%s2 + $0x28] sm:$0xf]
    %v97 = vld [vmem:[%s2 + $0x2c] sm:$0xf]
    %v98 = vld [vmem:[%s2 + $0x30] sm:$0xf]
    %v99 = vld [vmem:[%s2 + $0x34] sm:$0xf]
    %v100 = vld [vmem:[%s2 + $0x38] sm:$0xf]
    %v101 = vld [vmem:[%s2 + $0x3c] sm:$0xf]
    %v102 = vld [vmem:[%s3] sm:$0x1]
    %v104 = vlaneseq
    %v105 = vshrl.u32 %v104, 7
    %v106 = vsub.s32 0, %v105
    %v107 = vrot.slane %v102, %v106
    %v125 = vunpack.c.l.b16 %v86
    %v126 = vunpack.c.l.b16 %v87
    %v127 = vunpack.c.l.b16 %v88
    %v128 = vunpack.c.l.b16 %v89
    %v129 = vunpack.c.l.b16 %v90
    %v130 = vunpack.c.l.b16 %v91
    %v131 = vunpack.c.l.b16 %v92
    %v132 = vunpack.c.l.b16 %v93
    %v133 = vunpack.c.l.b16 %v94
    %v134 = vunpack.c.l.b16 %v95
    %v135 = vunpack.c.l.b16 %v96
    %v136 = vunpack.c.l.b16 %v97
    %v137 = vunpack.c.l.b16 %v98
    %v138 = vunpack.c.l.b16 %v99
    %v139 = vunpack.c.l.b16 %v100
    %v140 = vunpack.c.l.b16 %v101
    %v141 = vpack.c.b16 %v126, %v125
    %v142 = vpack.c.b16 %v128, %v127
    %v143 = vpack.c.b16 %v130, %v129
    %v144 = vpack.c.b16 %v132, %v131
    %v145 = vpack.c.b16 %v134, %v133
    %v146 = vpack.c.b16 %v136, %v135
    %v147 = vpack.c.b16 %v138, %v137
    %v148 = vpack.c.b16 %v140, %v139
    %157 = vmatprep.subr.bf16.mxu0 0
    %158 = vmatpush1.bf16.msra.mxu0 %v148
    %159 = vmatprep.subr.bf16.mxu0 0
    %160 = vmatpush1.bf16.msra.mxu0 %v147
    %161 = vmatprep.subr.bf16.mxu0 0
    %162 = vmatpush1.bf16.msra.mxu0 %v146
    %163 = vmatprep.subr.bf16.mxu0 0
    %164 = vmatpush1.bf16.msra.mxu0 %v145
    %165 = vmatprep.subr.bf16.mxu0 0
    %166 = vmatpush1.bf16.msra.mxu0 %v144
    %167 = vmatprep.subr.bf16.mxu0 0
    %168 = vmatpush1.bf16.msra.mxu0 %v143
    %169 = vmatprep.subr.bf16.mxu0 0
    %170 = vmatpush1.bf16.msra.mxu0 %v142
    %171 = vmatprep.subr.bf16.mxu0 0
    %172 = vmatpush1.bf16.msra.mxu0 %v141
    %173 = vmatprep.subr.bf16.mxu0 0
    %174 = vmatpush2.bf16.msra.mxu0 0
    %175 = vmatprep.subr.bf16.mxu0 0
    %176 = vmatpush2.bf16.msra.mxu0 0
    %177 = vmatprep.subr.bf16.mxu0 0
    %178 = vmatpush2.bf16.msra.mxu0 0
    %179 = vmatprep.subr.bf16.mxu0 0
    %180 = vmatpush2.bf16.msra.mxu0 0
    %181 = vmatprep.subr.bf16.mxu0 0
    %182 = vmatpush2.bf16.msra.mxu0 0
    %183 = vmatprep.subr.bf16.mxu0 0
    %184 = vmatpush2.bf16.msra.mxu0 0
    %185 = vmatprep.subr.bf16.mxu0 0
    %186 = vmatpush2.bf16.msra.mxu0 0
    %187 = vmatprep.subr.bf16.mxu0 0
    %188 = vmatpush2.bf16.msra.mxu0 0
    %189 = vmatprep.mubr.bf16.mxu0 0
    %190 = vmatmul.mubr.bf16.gmra.mxu0 %v85
    %v191 = vpop.f32.mrf.mxu0
    %v192 = vadd.f32 %v107, %v191
    %v193 = vpop.f32.mrf.mxu0
    %v194 = vpop.f32.mrf.mxu0
    %v195 = vadd.f32 %v107, %v194
    %v196 = vpop.f32.mrf.mxu0
    %197 = vdwg.mxu0
    %v198 = vmax.f32 %v192, 0.0
    %v199 = vmax.f32 %v195, 0.0
    %v200 = vpack.c.bf16 %v199, %v198
    %v201 = vld [vmem:[%s4] sm:$0xf]
    %v202 = vld [vmem:[%s4 + $0x4] sm:$0xf]
    %v203 = vld [vmem:[%s4 + $0x8] sm:$0xf]
    %v204 = vld [vmem:[%s4 + $0xc] sm:$0xf]
    %v205 = vld [vmem:[%s4 + $0x10] sm:$0xf]
    %v206 = vld [vmem:[%s4 + $0x14] sm:$0xf]
    %v207 = vld [vmem:[%s4 + $0x18] sm:$0xf]
    %v208 = vld [vmem:[%s4 + $0x1c] sm:$0xf]
    %v209 = vld [vmem:[%s4 + $0x20] sm:$0xf]
    %v210 = vld [vmem:[%s4 + $0x24] sm:$0xf]
    %v211 = vld [vmem:[%s4 + $0x28] sm:$0xf]
    %v212 = vld [vmem:[%s4 + $0x2c] sm:$0xf]
    %v213 = vld [vmem:[%s4 + $0x30] sm:$0xf]
    %v214 = vld [vmem:[%s4 + $0x34] sm:$0xf]
    %v215 = vld [vmem:[%s4 + $0x38] sm:$0xf]
    %v216 = vld [vmem:[%s4 + $0x3c] sm:$0xf]
    %v217 = vld [vmem:[%s5] sm:$0x1]
    %v219 = vlaneseq
    %v220 = vshrl.u32 %v219, 7
    %v221 = vsub.s32 0, %v220
    %v222 = vrot.slane %v217, %v221
    %v240 = vunpack.c.l.b16 %v201
    %v241 = vunpack.c.l.b16 %v202
    %v242 = vunpack.c.l.b16 %v203
    %v243 = vunpack.c.l.b16 %v204
    %v244 = vunpack.c.l.b16 %v205
    %v245 = vunpack.c.l.b16 %v206
    %v246 = vunpack.c.l.b16 %v207
    %v247 = vunpack.c.l.b16 %v208
    %v248 = vunpack.c.l.b16 %v209
    %v249 = vunpack.c.l.b16 %v210
    %v250 = vunpack.c.l.b16 %v211
    %v251 = vunpack.c.l.b16 %v212
    %v252 = vunpack.c.l.b16 %v213
    %v253 = vunpack.c.l.b16 %v214
    %v254 = vunpack.c.l.b16 %v215
    %v255 = vunpack.c.l.b16 %v216
    %v256 = vpack.c.b16 %v241, %v240
    %v257 = vpack.c.b16 %v243, %v242
    %v258 = vpack.c.b16 %v245, %v244
    %v259 = vpack.c.b16 %v247, %v246
    %v260 = vpack.c.b16 %v249, %v248
    %v261 = vpack.c.b16 %v251, %v250
    %v262 = vpack.c.b16 %v253, %v252
    %v263 = vpack.c.b16 %v255, %v254
    %272 = vmatprep.subr.bf16.mxu0 0
    %273 = vmatpush1.bf16.msra.mxu0 %v263
    %274 = vmatprep.subr.bf16.mxu0 0
    %275 = vmatpush1.bf16.msra.mxu0 %v262
    %276 = vmatprep.subr.bf16.mxu0 0
    %277 = vmatpush1.bf16.msra.mxu0 %v261
    %278 = vmatprep.subr.bf16.mxu0 0
    %279 = vmatpush1.bf16.msra.mxu0 %v260
    %280 = vmatprep.subr.bf16.mxu0 0
    %281 = vmatpush1.bf16.msra.mxu0 %v259
    %282 = vmatprep.subr.bf16.mxu0 0
    %283 = vmatpush1.bf16.msra.mxu0 %v258
    %284 = vmatprep.subr.bf16.mxu0 0
    %285 = vmatpush1.bf16.msra.mxu0 %v257
    %286 = vmatprep.subr.bf16.mxu0 0
    %287 = vmatpush1.bf16.msra.mxu0 %v256
    %288 = vmatprep.subr.bf16.mxu0 0
    %289 = vmatpush2.bf16.msra.mxu0 0
    %290 = vmatprep.subr.bf16.mxu0 0
    %291 = vmatpush2.bf16.msra.mxu0 0
    %292 = vmatprep.subr.bf16.mxu0 0
    %293 = vmatpush2.bf16.msra.mxu0 0
    %294 = vmatprep.subr.bf16.mxu0 0
    %295 = vmatpush2.bf16.msra.mxu0 0
    %296 = vmatprep.subr.bf16.mxu0 0
    %297 = vmatpush2.bf16.msra.mxu0 0
    %298 = vmatprep.subr.bf16.mxu0 0
    %299 = vmatpush2.bf16.msra.mxu0 0
    %300 = vmatprep.subr.bf16.mxu0 0
    %301 = vmatpush2.bf16.msra.mxu0 0
    %302 = vmatprep.subr.bf16.mxu0 0
    %303 = vmatpush2.bf16.msra.mxu0 0
    %304 = vmatprep.mubr.bf16.mxu0 0
    %305 = vmatmul.mubr.bf16.gmra.mxu0 %v200
    %v306 = vpop.f32.mrf.mxu0
    %v307 = vadd.f32 %v222, %v306
    %v308 = vpop.f32.mrf.mxu0
    %v309 = vpop.f32.mrf.mxu0
    %v310 = vadd.f32 %v222, %v309
    %v311 = vpop.f32.mrf.mxu0
    %312 = vdwg.mxu0
    %v313 = vmax.f32 %v307, 0.0
    %v314 = vmax.f32 %v310, 0.0
    %v315 = vpack.c.bf16 %v314, %v313
    %316 = vmatprep.subr.bf16.mxu0 0
    %317 = vmatpush1.bf16.msra.mxu0 0
    %318 = vmatprep.subr.bf16.mxu0 0
    %319 = vmatpush1.bf16.msra.mxu0 0
    %320 = vmatprep.subr.bf16.mxu0 0
    %321 = vmatpush1.bf16.msra.mxu0 0
    %322 = vmatprep.subr.bf16.mxu0 0
    %323 = vmatpush1.bf16.msra.mxu0 0
    %324 = vmatprep.subr.bf16.mxu0 0
    %325 = vmatpush1.bf16.msra.mxu0 0
    %326 = vmatprep.subr.bf16.mxu0 0
    %327 = vmatpush1.bf16.msra.mxu0 0
    %328 = vmatprep.subr.bf16.mxu0 0
    %329 = vmatpush1.bf16.msra.mxu0 0
    %330 = vmatprep.subr.bf16.mxu0 0
    %331 = vmatpush1.bf16.msra.mxu0 %v315
    %332 = vmatprep.subr.bf16.mxu0 0
    %333 = vmatpush2.bf16.msra.mxu0 0
    %334 = vmatprep.subr.bf16.mxu0 0
    %335 = vmatpush2.bf16.msra.mxu0 0
    %336 = vmatprep.subr.bf16.mxu0 0
    %337 = vmatpush2.bf16.msra.mxu0 0
    %338 = vmatprep.subr.bf16.mxu0 0
    %339 = vmatpush2.bf16.msra.mxu0 0
    %340 = vmatprep.subr.bf16.mxu0 0
    %341 = vmatpush2.bf16.msra.mxu0 0
    %342 = vmatprep.subr.bf16.mxu0 0
    %343 = vmatpush2.bf16.msra.mxu0 0
    %344 = vmatprep.subr.bf16.mxu0 0
    %345 = vmatpush2.bf16.msra.mxu0 0
    %346 = vmatprep.subr.bf16.mxu0 0
    %347 = vmatpush2.bf16.msra.mxu0 0
    %348 = vmatprep.mubr.bf16.mxu0 0
    %349 = vmatmul.mubr.bf16.gmra.mxu0 %v42
    %v350 = vpop.f32.mrf.mxu0
    %v351 = vadd.f32 0.0, %v350
    %v352 = vpop.f32.mrf.mxu0
    %v353 = vpop.f32.mrf.mxu0
    %v354 = vadd.f32 0.0, %v353
    %v355 = vpop.f32.mrf.mxu0
    %356 = vdwg.mxu0
    %v357 = vpack.c.bf16 %v354, %v351
    %s358 = scalar_lea.vmem %s2, 64
    %v359 = vld [vmem:[%s358] sm:$0xf]
    %v360 = vld [vmem:[%s358 + $0x4] sm:$0xf]
    %v361 = vld [vmem:[%s358 + $0x8] sm:$0xf]
    %v362 = vld [vmem:[%s358 + $0xc] sm:$0xf]
    %v363 = vld [vmem:[%s358 + $0x10] sm:$0xf]
    %v364 = vld [vmem:[%s358 + $0x14] sm:$0xf]
    %v365 = vld [vmem:[%s358 + $0x18] sm:$0xf]
    %v366 = vld [vmem:[%s358 + $0x1c] sm:$0xf]
    %v367 = vld [vmem:[%s358 + $0x20] sm:$0xf]
    %v368 = vld [vmem:[%s358 + $0x24] sm:$0xf]
    %v369 = vld [vmem:[%s358 + $0x28] sm:$0xf]
    %v370 = vld [vmem:[%s358 + $0x2c] sm:$0xf]
    %v371 = vld [vmem:[%s358 + $0x30] sm:$0xf]
    %v372 = vld [vmem:[%s358 + $0x34] sm:$0xf]
    %v373 = vld [vmem:[%s358 + $0x38] sm:$0xf]
    %v374 = vld [vmem:[%s358 + $0x3c] sm:$0xf]
    %s375 = scalar_lea.vmem %s3, 1
    %v376 = vld [vmem:[%s375] sm:$0x1]
    %v378 = vlaneseq
    %v379 = vshrl.u32 %v378, 7
    %v380 = vsub.s32 0, %v379
    %v381 = vrot.slane %v376, %v380
    %v399 = vunpack.c.l.b16 %v359
    %v400 = vunpack.c.l.b16 %v360
    %v401 = vunpack.c.l.b16 %v361
    %v402 = vunpack.c.l.b16 %v362
    %v403 = vunpack.c.l.b16 %v363
    %v404 = vunpack.c.l.b16 %v364
    %v405 = vunpack.c.l.b16 %v365
    %v406 = vunpack.c.l.b16 %v366
    %v407 = vunpack.c.l.b16 %v367
    %v408 = vunpack.c.l.b16 %v368
    %v409 = vunpack.c.l.b16 %v369
    %v410 = vunpack.c.l.b16 %v370
    %v411 = vunpack.c.l.b16 %v371
    %v412 = vunpack.c.l.b16 %v372
    %v413 = vunpack.c.l.b16 %v373
    %v414 = vunpack.c.l.b16 %v374
    %v415 = vpack.c.b16 %v400, %v399
    %v416 = vpack.c.b16 %v402, %v401
    %v417 = vpack.c.b16 %v404, %v403
    %v418 = vpack.c.b16 %v406, %v405
    %v419 = vpack.c.b16 %v408, %v407
    %v420 = vpack.c.b16 %v410, %v409
    %v421 = vpack.c.b16 %v412, %v411
    %v422 = vpack.c.b16 %v414, %v413
    %431 = vmatprep.subr.bf16.mxu0 0
    %432 = vmatpush1.bf16.msra.mxu0 %v422
    %433 = vmatprep.subr.bf16.mxu0 0
    %434 = vmatpush1.bf16.msra.mxu0 %v421
    %435 = vmatprep.subr.bf16.mxu0 0
    %436 = vmatpush1.bf16.msra.mxu0 %v420
    %437 = vmatprep.subr.bf16.mxu0 0
    %438 = vmatpush1.bf16.msra.mxu0 %v419
    %439 = vmatprep.subr.bf16.mxu0 0
    %440 = vmatpush1.bf16.msra.mxu0 %v418
    %441 = vmatprep.subr.bf16.mxu0 0
    %442 = vmatpush1.bf16.msra.mxu0 %v417
    %443 = vmatprep.subr.bf16.mxu0 0
    %444 = vmatpush1.bf16.msra.mxu0 %v416
    %445 = vmatprep.subr.bf16.mxu0 0
    %446 = vmatpush1.bf16.msra.mxu0 %v415
    %447 = vmatprep.subr.bf16.mxu0 0
    %448 = vmatpush2.bf16.msra.mxu0 0
    %449 = vmatprep.subr.bf16.mxu0 0
    %450 = vmatpush2.bf16.msra.mxu0 0
    %451 = vmatprep.subr.bf16.mxu0 0
    %452 = vmatpush2.bf16.msra.mxu0 0
    %453 = vmatprep.subr.bf16.mxu0 0
    %454 = vmatpush2.bf16.msra.mxu0 0
    %455 = vmatprep.subr.bf16.mxu0 0
    %456 = vmatpush2.bf16.msra.mxu0 0
    %457 = vmatprep.subr.bf16.mxu0 0
    %458 = vmatpush2.bf16.msra.mxu0 0
    %459 = vmatprep.subr.bf16.mxu0 0
    %460 = vmatpush2.bf16.msra.mxu0 0
    %461 = vmatprep.subr.bf16.mxu0 0
    %462 = vmatpush2.bf16.msra.mxu0 0
    %463 = vmatprep.mubr.bf16.mxu0 0
    %464 = vmatmul.mubr.bf16.gmra.mxu0 %v357
    %v465 = vpop.f32.mrf.mxu0
    %v466 = vadd.f32 %v381, %v465
    %v467 = vpop.f32.mrf.mxu0
    %v468 = vpop.f32.mrf.mxu0
    %v469 = vadd.f32 %v381, %v468
    %v470 = vpop.f32.mrf.mxu0
    %471 = vdwg.mxu0
    %v472 = vmax.f32 %v466, 0.0
    %v473 = vmax.f32 %v469, 0.0
    %v474 = vpack.c.bf16 %v473, %v472
    %s475 = scalar_lea.vmem %s4, 64
    %v476 = vld [vmem:[%s475] sm:$0xf]
    %v477 = vld [vmem:[%s475 + $0x4] sm:$0xf]
    %v478 = vld [vmem:[%s475 + $0x8] sm:$0xf]
    %v479 = vld [vmem:[%s475 + $0xc] sm:$0xf]
    %v480 = vld [vmem:[%s475 + $0x10] sm:$0xf]
    %v481 = vld [vmem:[%s475 + $0x14] sm:$0xf]
    %v482 = vld [vmem:[%s475 + $0x18] sm:$0xf]
    %v483 = vld [vmem:[%s475 + $0x1c] sm:$0xf]
    %v484 = vld [vmem:[%s475 + $0x20] sm:$0xf]
    %v485 = vld [vmem:[%s475 + $0x24] sm:$0xf]
    %v486 = vld [vmem:[%s475 + $0x28] sm:$0xf]
    %v487 = vld [vmem:[%s475 + $0x2c] sm:$0xf]
    %v488 = vld [vmem:[%s475 + $0x30] sm:$0xf]
    %v489 = vld [vmem:[%s475 + $0x34] sm:$0xf]
    %v490 = vld [vmem:[%s475 + $0x38] sm:$0xf]
    %v491 = vld [vmem:[%s475 + $0x3c] sm:$0xf]
    %s492 = scalar_lea.vmem %s5, 1
    %v493 = vld [vmem:[%s492] sm:$0x1]
    %v495 = vlaneseq
    %v496 = vshrl.u32 %v495, 7
    %v497 = vsub.s32 0, %v496
    %v498 = vrot.slane %v493, %v497
    %v516 = vunpack.c.l.b16 %v476
    %v517 = vunpack.c.l.b16 %v477
    %v518 = vunpack.c.l.b16 %v478
    %v519 = vunpack.c.l.b16 %v479
    %v520 = vunpack.c.l.b16 %v480
    %v521 = vunpack.c.l.b16 %v481
    %v522 = vunpack.c.l.b16 %v482
    %v523 = vunpack.c.l.b16 %v483
    %v524 = vunpack.c.l.b16 %v484
    %v525 = vunpack.c.l.b16 %v485
    %v526 = vunpack.c.l.b16 %v486
    %v527 = vunpack.c.l.b16 %v487
    %v528 = vunpack.c.l.b16 %v488
    %v529 = vunpack.c.l.b16 %v489
    %v530 = vunpack.c.l.b16 %v490
    %v531 = vunpack.c.l.b16 %v491
    %v532 = vpack.c.b16 %v517, %v516
    %v533 = vpack.c.b16 %v519, %v518
    %v534 = vpack.c.b16 %v521, %v520
    %v535 = vpack.c.b16 %v523, %v522
    %v536 = vpack.c.b16 %v525, %v524
    %v537 = vpack.c.b16 %v527, %v526
    %v538 = vpack.c.b16 %v529, %v528
    %v539 = vpack.c.b16 %v531, %v530
    %548 = vmatprep.subr.bf16.mxu0 0
    %549 = vmatpush1.bf16.msra.mxu0 %v539
    %550 = vmatprep.subr.bf16.mxu0 0
    %551 = vmatpush1.bf16.msra.mxu0 %v538
    %552 = vmatprep.subr.bf16.mxu0 0
    %553 = vmatpush1.bf16.msra.mxu0 %v537
    %554 = vmatprep.subr.bf16.mxu0 0
    %555 = vmatpush1.bf16.msra.mxu0 %v536
    %556 = vmatprep.subr.bf16.mxu0 0
    %557 = vmatpush1.bf16.msra.mxu0 %v535
    %558 = vmatprep.subr.bf16.mxu0 0
    %559 = vmatpush1.bf16.msra.mxu0 %v534
    %560 = vmatprep.subr.bf16.mxu0 0
    %561 = vmatpush1.bf16.msra.mxu0 %v533
    %562 = vmatprep.subr.bf16.mxu0 0
    %563 = vmatpush1.bf16.msra.mxu0 %v532
    %564 = vmatprep.subr.bf16.mxu0 0
    %565 = vmatpush2.bf16.msra.mxu0 0
    %566 = vmatprep.subr.bf16.mxu0 0
    %567 = vmatpush2.bf16.msra.mxu0 0
    %568 = vmatprep.subr.bf16.mxu0 0
    %569 = vmatpush2.bf16.msra.mxu0 0
    %570 = vmatprep.subr.bf16.mxu0 0
    %571 = vmatpush2.bf16.msra.mxu0 0
    %572 = vmatprep.subr.bf16.mxu0 0
    %573 = vmatpush2.bf16.msra.mxu0 0
    %574 = vmatprep.subr.bf16.mxu0 0
    %575 = vmatpush2.bf16.msra.mxu0 0
    %576 = vmatprep.subr.bf16.mxu0 0
    %577 = vmatpush2.bf16.msra.mxu0 0
    %578 = vmatprep.subr.bf16.mxu0 0
    %579 = vmatpush2.bf16.msra.mxu0 0
    %580 = vmatprep.mubr.bf16.mxu0 0
    %581 = vmatmul.mubr.bf16.gmra.mxu0 %v474
    %v582 = vpop.f32.mrf.mxu0
    %v583 = vadd.f32 %v498, %v582
    %v584 = vpop.f32.mrf.mxu0
    %v585 = vpop.f32.mrf.mxu0
    %v586 = vadd.f32 %v498, %v585
    %v587 = vpop.f32.mrf.mxu0
    %588 = vdwg.mxu0
    %v589 = vmax.f32 %v583, 0.0
    %v590 = vmax.f32 %v586, 0.0
    %v591 = vpack.c.bf16 %v590, %v589
    %592 = vmatprep.subr.bf16.mxu0 0
    %593 = vmatpush1.bf16.msra.mxu0 0
    %594 = vmatprep.subr.bf16.mxu0 0
    %595 = vmatpush1.bf16.msra.mxu0 0
    %596 = vmatprep.subr.bf16.mxu0 0
    %597 = vmatpush1.bf16.msra.mxu0 0
    %598 = vmatprep.subr.bf16.mxu0 0
    %599 = vmatpush1.bf16.msra.mxu0 0
    %600 = vmatprep.subr.bf16.mxu0 0
    %601 = vmatpush1.bf16.msra.mxu0 0
    %602 = vmatprep.subr.bf16.mxu0 0
    %603 = vmatpush1.bf16.msra.mxu0 0
    %604 = vmatprep.subr.bf16.mxu0 0
    %605 = vmatpush1.bf16.msra.mxu0 0
    %606 = vmatprep.subr.bf16.mxu0 0
    %607 = vmatpush1.bf16.msra.mxu0 %v591
    %608 = vmatprep.subr.bf16.mxu0 0
    %609 = vmatpush2.bf16.msra.mxu0 0
    %610 = vmatprep.subr.bf16.mxu0 0
    %611 = vmatpush2.bf16.msra.mxu0 0
    %612 = vmatprep.subr.bf16.mxu0 0
    %613 = vmatpush2.bf16.msra.mxu0 0
    %614 = vmatprep.subr.bf16.mxu0 0
    %615 = vmatpush2.bf16.msra.mxu0 0
    %616 = vmatprep.subr.bf16.mxu0 0
    %617 = vmatpush2.bf16.msra.mxu0 0
    %618 = vmatprep.subr.bf16.mxu0 0
    %619 = vmatpush2.bf16.msra.mxu0 0
    %620 = vmatprep.subr.bf16.mxu0 0
    %621 = vmatpush2.bf16.msra.mxu0 0
    %622 = vmatprep.subr.bf16.mxu0 0
    %623 = vmatpush2.bf16.msra.mxu0 0
    %624 = vmatprep.mubr.bf16.mxu0 0
    %625 = vmatmul.mubr.bf16.gmra.mxu0 %v42
    %v626 = vpop.f32.mrf.mxu0
    %v627 = vadd.f32 0.0, %v626
    %v628 = vpop.f32.mrf.mxu0
    %v629 = vpop.f32.mrf.mxu0
    %v630 = vadd.f32 0.0, %v629
    %v631 = vpop.f32.mrf.mxu0
    %632 = vdwg.mxu0
    %v633 = vpack.c.bf16 %v630, %v627
    %s634 = scalar_lea.vmem %s2, 128
    %v635 = vld [vmem:[%s634] sm:$0xf]
    %v636 = vld [vmem:[%s634 + $0x4] sm:$0xf]
    %v637 = vld [vmem:[%s634 + $0x8] sm:$0xf]
    %v638 = vld [vmem:[%s634 + $0xc] sm:$0xf]
    %v639 = vld [vmem:[%s634 + $0x10] sm:$0xf]
    %v640 = vld [vmem:[%s634 + $0x14] sm:$0xf]
    %v641 = vld [vmem:[%s634 + $0x18] sm:$0xf]
    %v642 = vld [vmem:[%s634 + $0x1c] sm:$0xf]
    %v643 = vld [vmem:[%s634 + $0x20] sm:$0xf]
    %v644 = vld [vmem:[%s634 + $0x24] sm:$0xf]
    %v645 = vld [vmem:[%s634 + $0x28] sm:$0xf]
    %v646 = vld [vmem:[%s634 + $0x2c] sm:$0xf]
    %v647 = vld [vmem:[%s634 + $0x30] sm:$0xf]
    %v648 = vld [vmem:[%s634 + $0x34] sm:$0xf]
    %v649 = vld [vmem:[%s634 + $0x38] sm:$0xf]
    %v650 = vld [vmem:[%s634 + $0x3c] sm:$0xf]
    %s651 = scalar_lea.vmem %s3, 2
    %v652 = vld [vmem:[%s651] sm:$0x1]
    %v654 = vlaneseq
    %v655 = vshrl.u32 %v654, 7
    %v656 = vsub.s32 0, %v655
    %v657 = vrot.slane %v652, %v656
    %v675 = vunpack.c.l.b16 %v635
    %v676 = vunpack.c.l.b16 %v636
    %v677 = vunpack.c.l.b16 %v637
    %v678 = vunpack.c.l.b16 %v638
    %v679 = vunpack.c.l.b16 %v639
    %v680 = vunpack.c.l.b16 %v640
    %v681 = vunpack.c.l.b16 %v641
    %v682 = vunpack.c.l.b16 %v642
    %v683 = vunpack.c.l.b16 %v643
    %v684 = vunpack.c.l.b16 %v644
    %v685 = vunpack.c.l.b16 %v645
    %v686 = vunpack.c.l.b16 %v646
    %v687 = vunpack.c.l.b16 %v647
    %v688 = vunpack.c.l.b16 %v648
    %v689 = vunpack.c.l.b16 %v649
    %v690 = vunpack.c.l.b16 %v650
    %v691 = vpack.c.b16 %v676, %v675
    %v692 = vpack.c.b16 %v678, %v677
    %v693 = vpack.c.b16 %v680, %v679
    %v694 = vpack.c.b16 %v682, %v681
    %v695 = vpack.c.b16 %v684, %v683
    %v696 = vpack.c.b16 %v686, %v685
    %v697 = vpack.c.b16 %v688, %v687
    %v698 = vpack.c.b16 %v690, %v689
    %707 = vmatprep.subr.bf16.mxu0 0
    %708 = vmatpush1.bf16.msra.mxu0 %v698
    %709 = vmatprep.subr.bf16.mxu0 0
    %710 = vmatpush1.bf16.msra.mxu0 %v697
    %711 = vmatprep.subr.bf16.mxu0 0
    %712 = vmatpush1.bf16.msra.mxu0 %v696
    %713 = vmatprep.subr.bf16.mxu0 0
    %714 = vmatpush1.bf16.msra.mxu0 %v695
    %715 = vmatprep.subr.bf16.mxu0 0
    %716 = vmatpush1.bf16.msra.mxu0 %v694
    %717 = vmatprep.subr.bf16.mxu0 0
    %718 = vmatpush1.bf16.msra.mxu0 %v693
    %719 = vmatprep.subr.bf16.mxu0 0
    %720 = vmatpush1.bf16.msra.mxu0 %v692
    %721 = vmatprep.subr.bf16.mxu0 0
    %722 = vmatpush1.bf16.msra.mxu0 %v691
    %723 = vmatprep.subr.bf16.mxu0 0
    %724 = vmatpush2.bf16.msra.mxu0 0
    %725 = vmatprep.subr.bf16.mxu0 0
    %726 = vmatpush2.bf16.msra.mxu0 0
    %727 = vmatprep.subr.bf16.mxu0 0
    %728 = vmatpush2.bf16.msra.mxu0 0
    %729 = vmatprep.subr.bf16.mxu0 0
    %730 = vmatpush2.bf16.msra.mxu0 0
    %731 = vmatprep.subr.bf16.mxu0 0
    %732 = vmatpush2.bf16.msra.mxu0 0
    %733 = vmatprep.subr.bf16.mxu0 0
    %734 = vmatpush2.bf16.msra.mxu0 0
    %735 = vmatprep.subr.bf16.mxu0 0
    %736 = vmatpush2.bf16.msra.mxu0 0
    %737 = vmatprep.subr.bf16.mxu0 0
    %738 = vmatpush2.bf16.msra.mxu0 0
    %739 = vmatprep.mubr.bf16.mxu0 0
    %740 = vmatmul.mubr.bf16.gmra.mxu0 %v633
    %v741 = vpop.f32.mrf.mxu0
    %v742 = vadd.f32 %v657, %v741
    %v743 = vpop.f32.mrf.mxu0
    %v744 = vpop.f32.mrf.mxu0
    %v745 = vadd.f32 %v657, %v744
    %v746 = vpop.f32.mrf.mxu0
    %747 = vdwg.mxu0
    %v748 = vmax.f32 %v742, 0.0
    %v749 = vmax.f32 %v745, 0.0
    %v750 = vpack.c.bf16 %v749, %v748
    %s751 = scalar_lea.vmem %s4, 128
    %v752 = vld [vmem:[%s751] sm:$0xf]
    %v753 = vld [vmem:[%s751 + $0x4] sm:$0xf]
    %v754 = vld [vmem:[%s751 + $0x8] sm:$0xf]
    %v755 = vld [vmem:[%s751 + $0xc] sm:$0xf]
    %v756 = vld [vmem:[%s751 + $0x10] sm:$0xf]
    %v757 = vld [vmem:[%s751 + $0x14] sm:$0xf]
    %v758 = vld [vmem:[%s751 + $0x18] sm:$0xf]
    %v759 = vld [vmem:[%s751 + $0x1c] sm:$0xf]
    %v760 = vld [vmem:[%s751 + $0x20] sm:$0xf]
    %v761 = vld [vmem:[%s751 + $0x24] sm:$0xf]
    %v762 = vld [vmem:[%s751 + $0x28] sm:$0xf]
    %v763 = vld [vmem:[%s751 + $0x2c] sm:$0xf]
    %v764 = vld [vmem:[%s751 + $0x30] sm:$0xf]
    %v765 = vld [vmem:[%s751 + $0x34] sm:$0xf]
    %v766 = vld [vmem:[%s751 + $0x38] sm:$0xf]
    %v767 = vld [vmem:[%s751 + $0x3c] sm:$0xf]
    %s768 = scalar_lea.vmem %s5, 2
    %v769 = vld [vmem:[%s768] sm:$0x1]
    %v771 = vlaneseq
    %v772 = vshrl.u32 %v771, 7
    %v773 = vsub.s32 0, %v772
    %v774 = vrot.slane %v769, %v773
    %v792 = vunpack.c.l.b16 %v752
    %v793 = vunpack.c.l.b16 %v753
    %v794 = vunpack.c.l.b16 %v754
    %v795 = vunpack.c.l.b16 %v755
    %v796 = vunpack.c.l.b16 %v756
    %v797 = vunpack.c.l.b16 %v757
    %v798 = vunpack.c.l.b16 %v758
    %v799 = vunpack.c.l.b16 %v759
    %v800 = vunpack.c.l.b16 %v760
    %v801 = vunpack.c.l.b16 %v761
    %v802 = vunpack.c.l.b16 %v762
    %v803 = vunpack.c.l.b16 %v763
    %v804 = vunpack.c.l.b16 %v764
    %v805 = vunpack.c.l.b16 %v765
    %v806 = vunpack.c.l.b16 %v766
    %v807 = vunpack.c.l.b16 %v767
    %v808 = vpack.c.b16 %v793, %v792
    %v809 = vpack.c.b16 %v795, %v794
    %v810 = vpack.c.b16 %v797, %v796
    %v811 = vpack.c.b16 %v799, %v798
    %v812 = vpack.c.b16 %v801, %v800
    %v813 = vpack.c.b16 %v803, %v802
    %v814 = vpack.c.b16 %v805, %v804
    %v815 = vpack.c.b16 %v807, %v806
    %824 = vmatprep.subr.bf16.mxu0 0
    %825 = vmatpush1.bf16.msra.mxu0 %v815
    %826 = vmatprep.subr.bf16.mxu0 0
    %827 = vmatpush1.bf16.msra.mxu0 %v814
    %828 = vmatprep.subr.bf16.mxu0 0
    %829 = vmatpush1.bf16.msra.mxu0 %v813
    %830 = vmatprep.subr.bf16.mxu0 0
    %831 = vmatpush1.bf16.msra.mxu0 %v812
    %832 = vmatprep.subr.bf16.mxu0 0
    %833 = vmatpush1.bf16.msra.mxu0 %v811
    %834 = vmatprep.subr.bf16.mxu0 0
    %835 = vmatpush1.bf16.msra.mxu0 %v810
    %836 = vmatprep.subr.bf16.mxu0 0
    %837 = vmatpush1.bf16.msra.mxu0 %v809
    %838 = vmatprep.subr.bf16.mxu0 0
    %839 = vmatpush1.bf16.msra.mxu0 %v808
    %840 = vmatprep.subr.bf16.mxu0 0
    %841 = vmatpush2.bf16.msra.mxu0 0
    %842 = vmatprep.subr.bf16.mxu0 0
    %843 = vmatpush2.bf16.msra.mxu0 0
    %844 = vmatprep.subr.bf16.mxu0 0
    %845 = vmatpush2.bf16.msra.mxu0 0
    %846 = vmatprep.subr.bf16.mxu0 0
    %847 = vmatpush2.bf16.msra.mxu0 0
    %848 = vmatprep.subr.bf16.mxu0 0
    %849 = vmatpush2.bf16.msra.mxu0 0
    %850 = vmatprep.subr.bf16.mxu0 0
    %851 = vmatpush2.bf16.msra.mxu0 0
    %852 = vmatprep.subr.bf16.mxu0 0
    %853 = vmatpush2.bf16.msra.mxu0 0
    %854 = vmatprep.subr.bf16.mxu0 0
    %855 = vmatpush2.bf16.msra.mxu0 0
    %856 = vmatprep.mubr.bf16.mxu0 0
    %857 = vmatmul.mubr.bf16.gmra.mxu0 %v750
    %v858 = vpop.f32.mrf.mxu0
    %v859 = vadd.f32 %v774, %v858
    %v860 = vpop.f32.mrf.mxu0
    %v861 = vpop.f32.mrf.mxu0
    %v862 = vadd.f32 %v774, %v861
    %v863 = vpop.f32.mrf.mxu0
    %864 = vdwg.mxu0
    %865 = vst [vmem:[#allocation2] sm:$0xff] %v859
    %866 = vst [vmem:[#allocation2 + $0x8] sm:$0xff] %v862
    // Predicated region
    $region26: #{gnn_forward.1} parent=1 // pred_check
      _
    $region27: #{gnn_forward.1} parent=1 // pred_check_branch
      %868 = sbr.rel (0) target = $region29
    $region28: #{gnn_forward.1} parent=1 // pred_region
      %s870 = ssub.s32 256, 256
      %871 = vsyncadd [#allocation3], %s870
      %s872 = sshll.u32 [#allocation2], 4
      %s873 = int_to_ptr.vmem [resolvable:$true] %s872
      %878 = dma.vmem_to_hbm [thread:$0]  %s873, 256, %s6, [#allocation3], 128, 128, 8
    $region29: #{gnn_forward.1} parent=1 // pred_fallthru
      _
    // Predicated region
    $region30: #{gnn_forward.1} parent=1 // pred_check
      _
    $region31: #{gnn_forward.1} parent=1 // pred_check_branch
      %880 = sbr.rel (0) target = $region33
    $region32: #{gnn_forward.1} parent=1 // pred_region
      %881 = dma.done [#allocation3], 256
    $region33: #{gnn_forward.1} parent=1 // pred_fallthru
      _
    %882 = vsyncpa [#allocation3], 1

</llo_original>
